<compile_context>
chip_gen: v5e
topology: v5e:2x2
jax: 0.10.0
libtpu: 0.0.40
codegen_flags: <defaults>
</compile_context>

<pallas_src>
import functools

import jax
import jax.numpy as jnp
from jax import lax
from jax.experimental import pallas as pl
from jax.experimental.pallas import tpu as pltpu

LANES = 128


@functools.lru_cache(maxsize=None)
def _device_kind() -> str:
    try:
        return jax.devices()[0].device_kind.lower()
    except Exception:
        return ""


def _multi_tensorcore() -> bool:
    # Chips with >1 TensorCore per device, where a "parallel" grid axis can shard
    # across cores.  On 1-TC chips (v5e / v6e) an extra split is pure overhead.
    kind = _device_kind()
    return any(tag in kind for tag in ("v4", "v5p", "v7"))


def _max_block_elems() -> int:
    # 2048x128 f32 = 1 MiB per input block (double-buffered x 2 inputs = 4 MiB: safe
    # under every chip's default scoped-VMEM limit).  v7x: 2 MiB blocks so the
    # ~0.35us per-grid-step overhead stays amortized at 3.2 TB/s HBM.
    return (4096 if "v7" in _device_kind() else 2048) * LANES


def _bce_kernel(p_ref, t_ref, out_ref, *, valid_edge_rows, tiles_per_split,
                total_tiles, has_dead_tiles, edge_ragged, binary_targets):
    c = pl.program_id(0)      # core split ("parallel")
    i = pl.program_id(1)      # tile within the split (sequential reduction)
    blk = c * tiles_per_split + i

    @pl.when(i == 0)
    def _init():
        out_ref[...] = jnp.zeros_like(out_ref)

    def loss_terms():
        p = p_ref[...].astype(jnp.float32)
        t = t_ref[...].astype(jnp.float32)
        if binary_targets:
            # Hard {0,1} labels: one transcendental/element instead of two.
            # log(1 - |t - p|) == t*log(p) + (1-t)*log(1-p) for t in {0, 1}.
            return jnp.maximum(jnp.log(1.0 - jnp.abs(t - p)), jnp.float32(-100.0))
        # torch.nn.BCELoss clamps the log terms at -100; clamping BEFORE combining
        # with t avoids 0 * (-inf) = NaN at p == 0 or p == 1.
        log_p = jnp.maximum(jnp.log(p), jnp.float32(-100.0))
        log_1mp = jnp.maximum(jnp.log(1.0 - p), jnp.float32(-100.0))
        # == t*log(p) + (1-t)*log(1-p), with one fewer VPU op per element.
        return log_1mp + t * (log_p - log_1mp)

    def accumulate(term):
        r, cols = term.shape
        # VPU-only partial reduction into the resident (8, C) accumulator block;
        # the single cross-lane reduction happens once, in the wrapper.
        out_ref[...] += jnp.sum(term.reshape(r // 8, 8, cols), axis=0)

    if edge_ragged:
        @pl.when(blk < total_tiles - 1)          # interior tiles: no mask overhead
        def _interior():
            accumulate(loss_terms())

        @pl.when(blk == total_tiles - 1)         # only the real edge tile is masked
        def _edge():
            term = loss_terms()
            row = lax.broadcasted_iota(jnp.int32, term.shape, 0)
            accumulate(jnp.where(row < valid_edge_rows, term, jnp.float32(0.0)))
    elif has_dead_tiles:
        @pl.when(blk < total_tiles)              # skip duplicated/clamped tiles
        def _live():
            accumulate(loss_terms())
    else:
        accumulate(loss_terms())


def _as_slab(scores, targets):
    """Zero-copy 2-D views of the inputs (pads only in a rare corner case)."""
    n = int(scores.size)
    if n % LANES == 0:
        r, c = n // LANES, LANES                       # lane-dense, free reshape
        return scores.reshape(r, c), targets.reshape(r, c), r, c
    c = scores.shape[-1] if scores.ndim >= 2 else n    # natural last dim, free reshape
    c_pad = pl.cdiv(c, LANES) * LANES
    if c_pad * 8 <= _max_block_elems():
        r = n // c
        return scores.reshape(r, c), targets.reshape(r, c), r, c
    # Rare fallback: ragged element count AND last dim too wide for one row-block.
    # Pad with (p=1, t=1), which contributes exactly zero loss (no mask needed);
    # costs one extra HBM pass, but only in this corner case.
    r = pl.cdiv(n, LANES)
    pad = r * LANES - n
    p2d = jnp.pad(scores.reshape(-1), (0, pad), constant_values=1).reshape(r, LANES)
    t2d = jnp.pad(targets.reshape(-1), (0, pad), constant_values=1).reshape(r, LANES)
    return p2d, t2d, r, LANES


def bce_loss(scores: jax.Array, targets: jax.Array, *,
             binary_targets: bool = False) -> jax.Array:
    """Mean binary cross entropy (scores are probabilities), torch.nn.BCELoss parity.

    binary_targets=True is an opt-in fast path valid only for hard {0,1} labels
    (halves the transcendental count per element).
    """
    assert scores.shape == targets.shape
    n_elems = int(scores.size)
    assert n_elems > 0

    p2d, t2d, R, C = _as_slab(scores, targets)

    c_pad = pl.cdiv(C, LANES) * LANES
    rows_cap = max(8, (_max_block_elems() // c_pad) // 8 * 8)
    block_rows = min(rows_cap, pl.cdiv(R, 8) * 8)
    total_tiles = pl.cdiv(R, block_rows)

    num_splits = 2 if (_multi_tensorcore() and total_tiles > 1) else 1
    tiles_per_split = pl.cdiv(total_tiles, num_splits)
    has_dead_tiles = num_splits * tiles_per_split != total_tiles
    edge_ragged = (R % block_rows) != 0

    def in_map(cidx, i):
        # Clamp so a dead trailing iteration revisits the previous (real) edge block:
        # identical block index => the pipeline elides the DMA, and the kernel's
        # pl.when gates skip its compute.
        return (jnp.minimum(cidx * tiles_per_split + i, total_tiles - 1), 0)

    kernel = functools.partial(
        _bce_kernel,
        valid_edge_rows=R - (total_tiles - 1) * block_rows,
        tiles_per_split=tiles_per_split,
        total_tiles=total_tiles,
        has_dead_tiles=has_dead_tiles,
        edge_ragged=edge_ragged,
        binary_targets=binary_targets,
    )

    cost = pl.CostEstimate(
        flops=(4 if binary_targets else 6) * n_elems,
        transcendentals=(1 if binary_targets else 2) * n_elems,
        bytes_accessed=int(p2d.size * p2d.dtype.itemsize
                           + t2d.size * t2d.dtype.itemsize
                           + num_splits * 8 * C * 4),
    )

    partial_sums = pl.pallas_call(
        kernel,
        out_shape=jax.ShapeDtypeStruct((num_splits * 8, C), jnp.float32),
        grid_spec=pltpu.PrefetchScalarGridSpec(
            num_scalar_prefetch=0,
            grid=(num_splits, tiles_per_split),
            in_specs=[
                pl.BlockSpec((block_rows, C), in_map),
                pl.BlockSpec((block_rows, C), in_map),
            ],
            out_specs=pl.BlockSpec((8, C), lambda cidx, i: (cidx, 0)),
        ),
        compiler_params=pltpu.CompilerParams(
            dimension_semantics=("parallel", "arbitrary"),
        ),
        cost_estimate=cost,
    )(p2d, t2d)

    # Negation folded here; mean over the ORIGINAL element count (torch 'mean').
    return jnp.sum(partial_sums) * jnp.float32(-1.0 / n_elems)


def _ref_bce(scores, targets):
    s = scores.astype(jnp.float32)
    t = targets.astype(jnp.float32)
    log_p = jnp.maximum(jnp.log(s), -100.0)
    log_1mp = jnp.maximum(jnp.log(1.0 - s), -100.0)
    return jnp.mean(-(t * log_p + (1.0 - t) * log_1mp))


if __name__ == "__main__":
    key = jax.random.PRNGKey(0)

    # Module forward: scores = model_output['logits'] (already probabilities for
    # nn.BCELoss), targets = sample_list['targets'].
    shapes = [
        (2, 32),       # tiny, ragged element count: natural (R, C) slab, single tile
        (8, 16),       # lane-aligned 128 elems: dense (1, 128) slab
        (3, 333),      # ragged last dim: natural slab + edge row mask
        (257, 2048),   # multi-tile lane-dense, ragged edge tile, odd tile count
    ]
    for shape in shapes:
        key, k1, k2 = jax.random.split(key, 3)
        scores = jax.nn.sigmoid(jax.random.normal(k1, shape, jnp.float32))
        targets = jax.random.bernoulli(k2, 0.5, shape).astype(jnp.float32)

        loss = bce_loss(scores, targets)
        jax.block_until_ready(loss)
        ref = _ref_bce(scores, targets)
        assert jnp.allclose(loss, ref, rtol=1e-4, atol=1e-6), (shape, loss, ref)

    # Soft (non-binary) targets + bf16 scores: general two-log path, in-kernel upcast.
    key, k1, k2 = jax.random.split(key, 3)
    shape = (16, 160)
    scores = jax.nn.sigmoid(jax.random.normal(k1, shape, jnp.float32)).astype(jnp.bfloat16)
    targets = jax.random.uniform(k2, shape, jnp.float32)
    loss = bce_loss(scores, targets)
    jax.block_until_ready(loss)
    ref = _ref_bce(scores, targets)
    assert jnp.allclose(loss, ref, rtol=5e-3, atol=1e-5), (shape, loss, ref)

    # Opt-in single-log fast path for hard {0,1} labels.
    key, k1, k2 = jax.random.split(key, 3)
    shape = (64, 80)
    scores = jax.nn.sigmoid(jax.random.normal(k1, shape, jnp.float32))
    targets = jax.random.bernoulli(k2, 0.5, shape).astype(jnp.float32)
    loss = bce_loss(scores, targets, binary_targets=True)
    jax.block_until_ready(loss)
    ref = _ref_bce(scores, targets)
    assert jnp.allclose(loss, ref, rtol=1e-4, atol=1e-6), (shape, loss, ref)

    print("KERNEL_OK")
</pallas_src>

<mosaic_0001>
module attributes {stable_mosaic.version = 11 : i64} {
  func.func @_bce_kernel(%arg0: i32, %arg1: i32, %arg2: memref<8x32xf32, #tpu.memory_space<vmem>>, %arg3: memref<8x32xf32, #tpu.memory_space<vmem>>, %arg4: memref<8x32xf32, #tpu.memory_space<vmem>>) attributes {dimension_semantics = [#tpu.dimension_semantics<parallel>, #tpu.dimension_semantics<arbitrary>], iteration_bounds = array<i64: 1, 1>, scalar_prefetch = 0 : i64, scratch_operands = 0 : i64, tpu.core_type = #tpu.core_type<tc>, window_params = [{transform_indices = @transform_0, window_bounds = array<i64: 8, 32>}, {transform_indices = @transform_1, window_bounds = array<i64: 8, 32>}, {transform_indices = @transform_2, window_bounds = array<i64: 8, 32>}]} {
    %c1_i32 = arith.constant 1 : i32
    %0 = arith.muli %arg0, %c1_i32 : i32
    %1 = arith.addi %0, %arg1 : i32
    %c0_i32 = arith.constant 0 : i32
    %2 = arith.cmpi eq, %arg1, %c0_i32 : i32
    %3 = arith.extui %2 : i1 to i32
    %c0_i32_0 = arith.constant 0 : i32
    %4 = arith.cmpi ne, %3, %c0_i32_0 : i32
    scf.if %4 {
      %cst = arith.constant 0.000000e+00 : f32
      %11 = vector.broadcast %cst : f32 to vector<8x32xf32>
      %c0 = arith.constant 0 : index
      %c0_5 = arith.constant 0 : index
      %12 = vector.load %arg4[%c0, %c0_5] : memref<8x32xf32, #tpu.memory_space<vmem>>, vector<8x32xf32>
      tpu.vector_store %arg4[%c0, %c0_5], %11 {strides = array<i32>} : memref<8x32xf32, #tpu.memory_space<vmem>>, vector<8x32xf32>,
    } else {
    }
    %c0_i32_1 = arith.constant 0 : i32
    %5 = arith.cmpi slt, %1, %c0_i32_1 : i32
    %6 = arith.extui %5 : i1 to i32
    %c0_i32_2 = arith.constant 0 : i32
    %7 = arith.cmpi ne, %6, %c0_i32_2 : i32
    scf.if %7 {
      %c0 = arith.constant 0 : index
      %c0_5 = arith.constant 0 : index
      %11 = vector.load %arg2[%c0, %c0_5] : memref<8x32xf32, #tpu.memory_space<vmem>>, vector<8x32xf32>
      %c0_6 = arith.constant 0 : index
      %c0_7 = arith.constant 0 : index
      %12 = vector.load %arg3[%c0_6, %c0_7] : memref<8x32xf32, #tpu.memory_space<vmem>>, vector<8x32xf32>
      %13 = math.log %11 : vector<8x32xf32>
      %cst = arith.constant -1.000000e+02 : f32
      %14 = vector.broadcast %cst : f32 to vector<8x32xf32>
      %15 = arith.maximumf %13, %14 : vector<8x32xf32>
      %cst_8 = arith.constant 1.000000e+00 : f32
      %16 = vector.broadcast %cst_8 : f32 to vector<8x32xf32>
      %17 = arith.subf %16, %11 : vector<8x32xf32>
      %18 = math.log %17 : vector<8x32xf32>
      %cst_9 = arith.constant -1.000000e+02 : f32
      %19 = vector.broadcast %cst_9 : f32 to vector<8x32xf32>
      %20 = arith.maximumf %18, %19 : vector<8x32xf32>
      %21 = arith.subf %15, %20 : vector<8x32xf32>
      %22 = arith.mulf %12, %21 : vector<8x32xf32>
      %23 = arith.addf %20, %22 : vector<8x32xf32>
      %c0_10 = arith.constant 0 : index
      %c0_11 = arith.constant 0 : index
      %24 = vector.load %arg4[%c0_10, %c0_11] : memref<8x32xf32, #tpu.memory_space<vmem>>, vector<8x32xf32>
      %25 = vector.shape_cast %23 : vector<8x32xf32> to vector<1x8x32xf32>
      %cst_12 = arith.constant dense<0.000000e+00> : vector<8x32xf32>
      %26 = vector.multi_reduction <add>, %25, %cst_12 [0] : vector<1x8x32xf32> to vector<8x32xf32>
      %27 = arith.addf %24, %26 : vector<8x32xf32>
      %c0_13 = arith.constant 0 : index
      %c0_14 = arith.constant 0 : index
      %28 = vector.load %arg4[%c0_13, %c0_14] : memref<8x32xf32, #tpu.memory_space<vmem>>, vector<8x32xf32>
      tpu.vector_store %arg4[%c0_13, %c0_14], %27 {strides = array<i32>} : memref<8x32xf32, #tpu.memory_space<vmem>>, vector<8x32xf32>,
    } else {
    }
    %c0_i32_3 = arith.constant 0 : i32
    %8 = arith.cmpi eq, %1, %c0_i32_3 : i32
    %9 = arith.extui %8 : i1 to i32
    %c0_i32_4 = arith.constant 0 : i32
    %10 = arith.cmpi ne, %9, %c0_i32_4 : i32
    scf.if %10 {
      %c0 = arith.constant 0 : index
      %c0_5 = arith.constant 0 : index
      %11 = vector.load %arg2[%c0, %c0_5] : memref<8x32xf32, #tpu.memory_space<vmem>>, vector<8x32xf32>
      %c0_6 = arith.constant 0 : index
      %c0_7 = arith.constant 0 : index
      %12 = vector.load %arg3[%c0_6, %c0_7] : memref<8x32xf32, #tpu.memory_space<vmem>>, vector<8x32xf32>
      %13 = math.log %11 : vector<8x32xf32>
      %cst = arith.constant -1.000000e+02 : f32
      %14 = vector.broadcast %cst : f32 to vector<8x32xf32>
      %15 = arith.maximumf %13, %14 : vector<8x32xf32>
      %cst_8 = arith.constant 1.000000e+00 : f32
      %16 = vector.broadcast %cst_8 : f32 to vector<8x32xf32>
      %17 = arith.subf %16, %11 : vector<8x32xf32>
      %18 = math.log %17 : vector<8x32xf32>
      %cst_9 = arith.constant -1.000000e+02 : f32
      %19 = vector.broadcast %cst_9 : f32 to vector<8x32xf32>
      %20 = arith.maximumf %18, %19 : vector<8x32xf32>
      %21 = arith.subf %15, %20 : vector<8x32xf32>
      %22 = arith.mulf %12, %21 : vector<8x32xf32>
      %23 = arith.addf %20, %22 : vector<8x32xf32>
      %24 = tpu.iota {dimensions = array<i32: 0>} : vector<8x32xi32>
      %c2_i32 = arith.constant 2 : i32
      %25 = vector.broadcast %c2_i32 : i32 to vector<8x32xi32>
      %26 = arith.cmpi slt, %24, %25 : vector<8x32xi32>
      %cst_10 = arith.constant 0.000000e+00 : f32
      %27 = vector.broadcast %cst_10 : f32 to vector<8x32xf32>
      %28 = arith.select %26, %23, %27 : vector<8x32xi1>, vector<8x32xf32>
      %c0_11 = arith.constant 0 : index
      %c0_12 = arith.constant 0 : index
      %29 = vector.load %arg4[%c0_11, %c0_12] : memref<8x32xf32, #tpu.memory_space<vmem>>, vector<8x32xf32>
      %30 = vector.shape_cast %28 : vector<8x32xf32> to vector<1x8x32xf32>
      %cst_13 = arith.constant dense<0.000000e+00> : vector<8x32xf32>
      %31 = vector.multi_reduction <add>, %30, %cst_13 [0] : vector<1x8x32xf32> to vector<8x32xf32>
      %32 = arith.addf %29, %31 : vector<8x32xf32>
      %c0_14 = arith.constant 0 : index
      %c0_15 = arith.constant 0 : index
      %33 = vector.load %arg4[%c0_14, %c0_15] : memref<8x32xf32, #tpu.memory_space<vmem>>, vector<8x32xf32>
      tpu.vector_store %arg4[%c0_14, %c0_15], %32 {strides = array<i32>} : memref<8x32xf32, #tpu.memory_space<vmem>>, vector<8x32xf32>,
    } else {
    }
    return
  }
  func.func @transform_0(%arg0: i32, %arg1: i32) -> (i32, i32) {
    %c1_i32 = arith.constant 1 : i32
    %0 = arith.muli %arg0, %c1_i32 : i32
    %1 = arith.addi %0, %arg1 : i32
    %c0_i32 = arith.constant 0 : i32
    %2 = arith.minsi %1, %c0_i32 : i32
    %c0_i32_0 = arith.constant 0 : i32
    %c0_i32_1 = arith.constant 0 : i32
    return %2, %c0_i32_0 : i32, i32
  }
  func.func @transform_1(%arg0: i32, %arg1: i32) -> (i32, i32) {
    %c1_i32 = arith.constant 1 : i32
    %0 = arith.muli %arg0, %c1_i32 : i32
    %1 = arith.addi %0, %arg1 : i32
    %c0_i32 = arith.constant 0 : i32
    %2 = arith.minsi %1, %c0_i32 : i32
    %c0_i32_0 = arith.constant 0 : i32
    %c0_i32_1 = arith.constant 0 : i32
    return %2, %c0_i32_0 : i32, i32
  }
  func.func @transform_2(%arg0: i32, %arg1: i32) -> (i32, i32) {
    %c0_i32 = arith.constant 0 : i32
    %c0_i32_0 = arith.constant 0 : i32
    return %arg0, %c0_i32 : i32, i32
  }
}

</mosaic_0001>

<llo_original>
// kernel: tpu_custom_call.1
$region0: #{tpu_custom_call.1}
  #allocation0 [shape = 'u32[]', space=smem, size = 0x4, offset = 0x4, fixed_abs, tag = 'smem constant byte address 0x4 - core index']
  #allocation1 [shape = 'u32[72,128]{1,0:T(1,128)}', space=vmem, size = 0x9000, scoped, tag = 'internal scratch']
  %s0 = inlined_call_operand.hbm [shape: f32[2,32], index: 0, kind: input, shape index: {}]
  %s1 = inlined_call_operand.hbm [shape: f32[2,32], index: 1, kind: input, shape index: {}]
  %s2 = inlined_call_operand.hbm [shape: f32[8,32], index: 2, kind: output, shape index: {}]
  %s3 = sld [smem:[#allocation0]]
  $region38: #{tpu_custom_call.1} parent=0
    _
  %s5 = ssub.s32 1, %s3
  %s6 = scalar_select 0, %s5, %s3
  $region1: #{tpu_custom_call.1} parent=0
    #allocation2 [shape = 'u8[4096]{0}', space=vmem, size = 0x1000, scoped, tag = 'input window, operand 0, single buffered']
    #allocation3 [shape = 's32[1]{0}', space=sflag, size = 0x4, scoped, tag = 'scoped memory for tpu_custom_call.1']
    #allocation4 [shape = 's32[1]{0}', space=sflag, size = 0x4, scoped, tag = 'scoped memory for tpu_custom_call.1']
    #allocation5 [shape = 'u8[4096]{0}', space=vmem, size = 0x1000, scoped, tag = 'input window, operand 1, single buffered']
    #allocation6 [shape = 's32[1]{0}', space=sflag, size = 0x4, scoped, tag = 'scoped memory for tpu_custom_call.1']
    #allocation7 [shape = 'u8[4096]{0}', space=vmem, size = 0x1000, scoped, tag = 'output window, operand 0, single buffered']
    %7 = vsyncpa [#allocation3], 0
    %8 = vsyncpa [#allocation6], 0
    %9 = vsyncpa [#allocation4], 0
    // Predicated region
    $region2: #{tpu_custom_call.1} parent=1 // pred_check
      _
    $region3: #{tpu_custom_call.1} parent=1 // pred_check_branch
      %11 = sbr.rel (0) target = $region5
    $region4: #{tpu_custom_call.1} parent=1 // pred_region
      %s12 = sadd.s32 0, 0
      %p13 = scmp.lt.s32.totalorder %s12, 0
      %s14 = scalar_select %p13, %s12, 0
      %s15 = smul.u32 4, %s14
      %s16 = ssub.s32 1, %s15
      %s17 = smul.u32 2, %s16
      %s18 = ssub.s32 8, %s17
      %s19 = sshll.u32 %s18, 4
      %20 = vsyncadd [#allocation3], %s19
      %p21 = scmp.ne.s32.totalorder 0, %s17
      %s22 = smul.addr %s15, 2
      %s23 = scalar_lea.hbm %s0, %s22
      %s24 = smul.u32 2, %s16
      %s25 = sshll.u32 %s23, 4
      %s26 = int_to_ptr.hbm [resolvable:$true] %s25
      %s27 = sshll.u32 [#allocation2], 4
      %s28 = int_to_ptr.vmem [resolvable:$true] %s27
      %s29 = sshll.u32 %s24, 4
      %33 = dma.hbm_to_vmem [thread:$0]  (%p21), %s26, %s29, %s28, [#allocation3], 32, 32, 2
    $region5: #{tpu_custom_call.1} parent=1 // pred_fallthru
      _
    // Predicated region
    $region6: #{tpu_custom_call.1} parent=1 // pred_check
      _
    $region7: #{tpu_custom_call.1} parent=1 // pred_check_branch
      %35 = sbr.rel (0) target = $region9
    $region8: #{tpu_custom_call.1} parent=1 // pred_region
      %s36 = sadd.s32 0, 0
      %p37 = scmp.lt.s32.totalorder %s36, 0
      %s38 = scalar_select %p37, %s36, 0
      %s39 = smul.u32 4, %s38
      %s40 = ssub.s32 1, %s39
      %s41 = smul.u32 2, %s40
      %s42 = ssub.s32 8, %s41
      %s43 = sshll.u32 %s42, 4
      %44 = vsyncadd [#allocation6], %s43
      %p45 = scmp.ne.s32.totalorder 0, %s41
      %s46 = smul.addr %s39, 2
      %s47 = scalar_lea.hbm %s1, %s46
      %s48 = smul.u32 2, %s40
      %s49 = sshll.u32 %s47, 4
      %s50 = int_to_ptr.hbm [resolvable:$true] %s49
      %s51 = sshll.u32 [#allocation5], 4
      %s52 = int_to_ptr.vmem [resolvable:$true] %s51
      %s53 = sshll.u32 %s48, 4
      %57 = dma.hbm_to_vmem [thread:$0]  (%p45), %s50, %s53, %s52, [#allocation6], 32, 32, 2
    $region9: #{tpu_custom_call.1} parent=1 // pred_fallthru
      _
    // Predicated region
    $region10: #{tpu_custom_call.1} parent=1 // pred_check
      _
    $region11: #{tpu_custom_call.1} parent=1 // pred_check_branch
      %59 = sbr.rel (0) target = $region13
    $region12: #{tpu_custom_call.1} parent=1 // pred_region
      %61 = dma.done [#allocation3], 128
    $region13: #{tpu_custom_call.1} parent=1 // pred_fallthru
      _
    // Predicated region
    $region14: #{tpu_custom_call.1} parent=1 // pred_check
      _
    $region15: #{tpu_custom_call.1} parent=1 // pred_check_branch
      %63 = sbr.rel (0) target = $region17
    $region16: #{tpu_custom_call.1} parent=1 // pred_region
      %65 = dma.done [#allocation6], 128
    $region17: #{tpu_custom_call.1} parent=1 // pred_fallthru
      _
    %s66 = sadd.s32 0, 0
    %p67 = scmp.lt.s32.totalorder %s66, 0
    %s68 = scalar_select %p67, %s66, 0
    %s69 = smul.u32 4, %s68
    %s70 = ssub.s32 1, %s69
    %s71 = smul.u32 2, %s70
    %s72 = sadd.s32 0, 0
    %p73 = scmp.lt.s32.totalorder %s72, 0
    %s74 = scalar_select %p73, %s72, 0
    %s75 = smul.u32 4, %s74
    %s76 = ssub.s32 1, %s75
    %s77 = smul.u32 2, %s76
    %s78 = sadd.s32 0, 0
    %p79 = scmp.eq.s32.totalorder 0, 0
    // Predicated region
    $region18: #{tpu_custom_call.1} parent=1 // pred_check
      %p80 = pneg %p79
    $region19: #{tpu_custom_call.1} parent=1 // pred_check_branch
      %82 = sbr.rel (%p80) target = $region21
    $region20: #{tpu_custom_call.1} parent=1 // pred_region
      %vm83 = vcmask 261120
      %84 = vst.msk [vmem:[#allocation7] sm:$0xff] %vm83, 0.0
    $region21: #{tpu_custom_call.1} parent=1 // pred_fallthru
      _
    %p85 = scmp.lt.s32.totalorder %s78, 0
    // Predicated region
    $region22: #{tpu_custom_call.1} parent=1 // pred_check
      %p86 = pneg %p85
    $region23: #{tpu_custom_call.1} parent=1 // pred_check_branch
      %88 = sbr.rel (%p86) target = $region25
    $region24: #{tpu_custom_call.1} parent=1 // pred_region
      %v89 = vld [vmem:[#allocation2] sm:$0xff]
      %v90 = vld [vmem:[#allocation5] sm:$0xff]
      %v91 = vlog2.pop %v89
      %v92 = vmul.f32 %v91, 0.6931472
      %v93 = vmax.f32 %v92, -100.0
      %v94 = vsub.f32 1.0, %v89
      %v95 = vlog2.pop %v94
      %v96 = vmul.f32 %v95, 0.6931472
      %v97 = vmax.f32 %v96, -100.0
      %v98 = vsub.f32 %v93, %v97
      %v99 = vmul.f32 %v90, %v98
      %v100 = vadd.f32 %v97, %v99
      %v101 = vld [vmem:[#allocation7] sm:$0xff]
      %v102 = vadd.f32 %v100, 0.0
      %v103 = vadd.f32 %v101, %v102
      %vm104 = vcmask 261120
      %105 = vst.msk [vmem:[#allocation7] sm:$0xff] %vm104, %v103
    $region25: #{tpu_custom_call.1} parent=1 // pred_fallthru
      _
    %p106 = scmp.eq.s32.totalorder %s78, 0
    // Predicated region
    $region26: #{tpu_custom_call.1} parent=1 // pred_check
      %p107 = pneg %p106
    $region27: #{tpu_custom_call.1} parent=1 // pred_check_branch
      %109 = sbr.rel (%p107) target = $region29
    $region28: #{tpu_custom_call.1} parent=1 // pred_region
      %v110 = vld [vmem:[#allocation2] sm:$0xff]
      %v111 = vld [vmem:[#allocation5] sm:$0xff]
      %v112 = vlog2.pop %v110
      %v113 = vmul.f32 %v112, 0.6931472
      %v114 = vmax.f32 %v113, -100.0
      %v115 = vsub.f32 1.0, %v110
      %v116 = vlog2.pop %v115
      %v117 = vmul.f32 %v116, 0.6931472
      %v118 = vmax.f32 %v117, -100.0
      %v119 = vsub.f32 %v114, %v118
      %v120 = vmul.f32 %v111, %v119
      %v121 = vadd.f32 %v118, %v120
      %v122 = vlaneseq
      %v123 = vshrl.u32 %v122, 7
      %vm124 = vcmp.lt.s32.totalorder %v123, 2
      %v125 = vsel %vm124, %v121, 0.0
      %v126 = vld [vmem:[#allocation7] sm:$0xff]
      %v127 = vadd.f32 %v125, 0.0
      %v128 = vadd.f32 %v126, %v127
      %vm129 = vcmask 261120
      %130 = vst.msk [vmem:[#allocation7] sm:$0xff] %vm129, %v128
    $region29: #{tpu_custom_call.1} parent=1 // pred_fallthru
      _
    // Predicated region
    $region30: #{tpu_custom_call.1} parent=1 // pred_check
      _
    $region31: #{tpu_custom_call.1} parent=1 // pred_check_branch
      %132 = sbr.rel (0) target = $region33
    $region32: #{tpu_custom_call.1} parent=1 // pred_region
      %134 = vsyncadd [#allocation4], 0
      %s136 = sshll.u32 [#allocation7], 4
      %s137 = int_to_ptr.vmem [resolvable:$true] %s136
      %s138 = sshll.u32 %s2, 4
      %s139 = int_to_ptr.hbm [resolvable:$true] %s138
      %141 = dma.vmem_to_hbm [thread:$0]  %s137, 128, %s139, [#allocation4]
    $region33: #{tpu_custom_call.1} parent=1 // pred_fallthru
      _
    // Predicated region
    $region34: #{tpu_custom_call.1} parent=1 // pred_check
      _
    $region35: #{tpu_custom_call.1} parent=1 // pred_check_branch
      %143 = sbr.rel (0) target = $region37
    $region36: #{tpu_custom_call.1} parent=1 // pred_region
      %145 = dma.done [#allocation4], 128
    $region37: #{tpu_custom_call.1} parent=1 // pred_fallthru
      _
    %146 = vsyncpa [#allocation3], 1
    %147 = vsyncpa [#allocation6], 1
    %148 = vsyncpa [#allocation4], 1

</llo_original>
